<compile_context>
chip_gen: v5e
topology: v5e:2x2
jax: 0.10.0
libtpu: 0.0.40
codegen_flags: <defaults>
</compile_context>

<pallas_src>
import functools

import jax
import jax.numpy as jnp
from jax.experimental import pallas as pl
from jax.experimental.pallas import tpu as pltpu


def _one_hidden_layer_kernel(x_ref, w1_ref, b1_ref, w2_ref, b2_ref, o_ref):
    x = x_ref[...]                                            # (TB, IN)  bf16

    # fc1 (+ folded BatchNorm): x @ W1f + b1f   (MXU, f32 accumulate)
    h = jnp.dot(x, w1_ref[...], preferred_element_type=jnp.float32)
    h = h + b1_ref[...]                                       # (TB, H) f32

    # ReLU
    h = jnp.maximum(h, 0.0)

    # Dropout: identity in eval mode.

    # fc2: h @ W2 + b2   (MXU, bf16 inputs, f32 accumulate)
    logits = jnp.dot(h.astype(jnp.bfloat16), w2_ref[...],
                     preferred_element_type=jnp.float32)
    logits = logits + b2_ref[...]                             # (TB, OUT) f32

    # softmax over dim=1 — exact f32 normalization so rows sum to 1.
    m = jnp.max(logits, axis=1, keepdims=True)
    e = jnp.exp(logits - m)
    denom = jnp.sum(e, axis=1, keepdims=True)
    o_ref[...] = (e / denom).astype(o_ref.dtype)


def _round_up(n, m):
    return (n + m - 1) // m * m


def _pick_tile_and_vmem(batch, in_f, hid, out_f):
    """Batch tile (multiple of 8, capped) and a VMEM budget with headroom."""
    tb = min(_round_up(batch, 8), 1024)
    # Double-buffered streaming tiles: x (bf16) in, out (f32) out.
    stream = 2 * (tb * in_f * 2 + tb * out_f * 4)
    # Parameters (count 2 buffers conservatively): W1/W2 bf16, biases f32.
    resident = 2 * (in_f * hid * 2 + hid * out_f * 2 + hid * 4 + out_f * 4)
    # Intermediate (TB, H) f32 activations + general headroom.
    scratch = 2 * tb * hid * 4 + (2 << 20)
    vmem = stream + resident + scratch
    vmem = max(vmem, 4 << 20)
    vmem = min(vmem, 32 << 20)  # stay within v7x scoped comfort zone
    return tb, vmem


@jax.jit
def one_hidden_layer_forward(x, params):
    """x: (B, input_size) float32. params: dict of fc1/bn1/fc2 parameters."""
    B, IN = x.shape
    H = params["fc1_b"].shape[0]
    OUT = params["fc2_b"].shape[0]
    eps = 1e-5

    # Fold BatchNorm1d (eval mode) into fc1: one-time weight fold, no per-call
    # per-element work in the kernel.
    bn_scale = params["bn1_gamma"] / jnp.sqrt(params["bn1_running_var"] + eps)
    bn_shift = params["bn1_beta"] - params["bn1_running_mean"] * bn_scale
    w1_folded = params["fc1_w"].T * bn_scale[None, :]          # (IN, H)
    b1_folded = params["fc1_b"] * bn_scale + bn_shift          # (H,)
    w2_t = params["fc2_w"].T                                   # (H, OUT)

    tb, vmem_bytes = _pick_tile_and_vmem(B, IN, H, OUT)
    # TODO(synk): for very large IN/H add a K grid axis with a VMEM accumulator
    # instead of loading all of W1 in one resident block.

    # Pad batch to a multiple of the tile (zero rows; sliced off below).
    padded_B = _round_up(B, tb)
    x_p = x.astype(jnp.bfloat16)
    if padded_B != B:
        x_p = jnp.pad(x_p, ((0, padded_B - B), (0, 0)))

    args = (
        x_p,                                                   # (padded_B, IN) bf16
        w1_folded.astype(jnp.bfloat16),                        # (IN, H)  bf16
        b1_folded.reshape(1, -1).astype(jnp.float32),          # (1, H)   f32
        w2_t.astype(jnp.bfloat16),                             # (H, OUT) bf16
        params["fc2_b"].reshape(1, -1).astype(jnp.float32),    # (1, OUT) f32
    )

    grid = (padded_B // tb,)
    out = pl.pallas_call(
        _one_hidden_layer_kernel,
        out_shape=jax.ShapeDtypeStruct((padded_B, OUT), jnp.float32),
        grid=grid,
        in_specs=[
            pl.BlockSpec((tb, IN), lambda i: (i, 0)),          # streams
            pl.BlockSpec((IN, H), lambda i: (0, 0)),           # resident
            pl.BlockSpec((1, H), lambda i: (0, 0)),            # resident
            pl.BlockSpec((H, OUT), lambda i: (0, 0)),          # resident
            pl.BlockSpec((1, OUT), lambda i: (0, 0)),          # resident
        ],
        out_specs=pl.BlockSpec((tb, OUT), lambda i: (i, 0)),
        compiler_params=pltpu.CompilerParams(
            dimension_semantics=("parallel",),
            vmem_limit_bytes=vmem_bytes,
        ),
    )(*args)

    return out[:B]


def init_params(key, input_size, hidden_size):
    """Deterministic init mimicking PyTorch defaults (uniform +-1/sqrt(fan_in))."""
    k1, k2, k3, k4 = jax.random.split(key, 4)
    bound1 = 1.0 / jnp.sqrt(jnp.float32(input_size))
    bound2 = 1.0 / jnp.sqrt(jnp.float32(hidden_size))
    return {
        "fc1_w": jax.random.uniform(k1, (hidden_size, input_size),
                                    minval=-bound1, maxval=bound1,
                                    dtype=jnp.float32),
        "fc1_b": jax.random.uniform(k2, (hidden_size,),
                                    minval=-bound1, maxval=bound1,
                                    dtype=jnp.float32),
        "bn1_gamma": jnp.ones((hidden_size,), jnp.float32),
        "bn1_beta": jnp.zeros((hidden_size,), jnp.float32),
        "bn1_running_mean": jnp.zeros((hidden_size,), jnp.float32),
        "bn1_running_var": jnp.ones((hidden_size,), jnp.float32),
        "fc2_w": jax.random.uniform(k3, (2, hidden_size),
                                    minval=-bound2, maxval=bound2,
                                    dtype=jnp.float32),
        "fc2_b": jax.random.uniform(k4, (2,),
                                    minval=-bound2, maxval=bound2,
                                    dtype=jnp.float32),
    }


def _reference(x, params):
    """Pure-JAX f32 reference of the eval-mode forward pass."""
    eps = 1e-5
    h = x @ params["fc1_w"].T + params["fc1_b"]
    h = (h - params["bn1_running_mean"]) / jnp.sqrt(params["bn1_running_var"] + eps)
    h = h * params["bn1_gamma"] + params["bn1_beta"]
    h = jnp.maximum(h, 0.0)
    logits = h @ params["fc2_w"].T + params["fc2_b"]
    return jax.nn.softmax(logits, axis=1)


if __name__ == "__main__":
    key = jax.random.PRNGKey(0)
    k_x, k_p = jax.random.split(key)

    batch, input_size, hidden_size = 8, 16, 32
    x = jax.random.normal(k_x, (batch, input_size), dtype=jnp.float32)
    params = init_params(k_p, input_size, hidden_size)

    out = one_hidden_layer_forward(x, params)
    out = jax.block_until_ready(out)

    ref = _reference(x, params)
    assert out.shape == (batch, 2)
    # bf16 MXU inputs -> slightly looser tolerance than pure f32.
    assert jnp.allclose(out, ref, atol=2e-2, rtol=2e-2), (
        f"mismatch: max abs diff {jnp.max(jnp.abs(out - ref))}")
    # Exact f32 softmax normalization -> rows sum to 1 up to f32 rounding.
    assert jnp.allclose(jnp.sum(out, axis=1), 1.0, atol=1e-3)

    print("KERNEL_OK")
</pallas_src>

<mosaic_0001>
module attributes {stable_mosaic.version = 11 : i64} {
  func.func @_one_hidden_layer_kernel(%arg0: i32, %arg1: memref<8x16xbf16, #tpu.memory_space<vmem>>, %arg2: memref<16x32xbf16, #tpu.memory_space<vmem>>, %arg3: memref<1x32xf32, #tpu.memory_space<vmem>>, %arg4: memref<32x2xbf16, #tpu.memory_space<vmem>>, %arg5: memref<1x2xf32, #tpu.memory_space<vmem>>, %arg6: memref<8x2xf32, #tpu.memory_space<vmem>>) attributes {dimension_semantics = [#tpu.dimension_semantics<parallel>], iteration_bounds = array<i64: 1>, scalar_prefetch = 0 : i64, scratch_operands = 0 : i64, tpu.core_type = #tpu.core_type<tc>, window_params = [{transform_indices = @transform_0, window_bounds = array<i64: 8, 16>}, {pipeline_mode = #tpu.pipeline_mode<synchronous>, transform_indices = @transform_1, window_bounds = array<i64: 16, 32>}, {pipeline_mode = #tpu.pipeline_mode<synchronous>, transform_indices = @transform_2, window_bounds = array<i64: 1, 32>}, {pipeline_mode = #tpu.pipeline_mode<synchronous>, transform_indices = @transform_3, window_bounds = array<i64: 32, 2>}, {pipeline_mode = #tpu.pipeline_mode<synchronous>, transform_indices = @transform_4, window_bounds = array<i64: 1, 2>}, {transform_indices = @transform_5, window_bounds = array<i64: 8, 2>}]} {
    %c0 = arith.constant 0 : index
    %c0_0 = arith.constant 0 : index
    %0 = vector.load %arg1[%c0, %c0_0] : memref<8x16xbf16, #tpu.memory_space<vmem>>, vector<8x16xbf16>
    %c0_1 = arith.constant 0 : index
    %c0_2 = arith.constant 0 : index
    %1 = vector.load %arg2[%c0_1, %c0_2] : memref<16x32xbf16, #tpu.memory_space<vmem>>, vector<16x32xbf16>
    %cst = arith.constant dense<0.000000e+00> : vector<8x32xf32>
    %2 = tpu.matmul %0, %1, %cst {dimension_numbers = #tpu.dot_dimension_numbers<[1], [0], [0], [1], [0, 0, 1, 1], [], []>} : vector<8x16xbf16>, vector<16x32xbf16>, vector<8x32xf32> -> vector<8x32xf32>
    %c0_3 = arith.constant 0 : index
    %c0_4 = arith.constant 0 : index
    %3 = vector.load %arg3[%c0_3, %c0_4] : memref<1x32xf32, #tpu.memory_space<vmem>>, vector<1x32xf32>
    %4 = vector.broadcast %3 : vector<1x32xf32> to vector<8x32xf32>
    %5 = arith.addf %2, %4 : vector<8x32xf32>
    %cst_5 = arith.constant 0.000000e+00 : f32
    %6 = vector.broadcast %cst_5 : f32 to vector<8x32xf32>
    %7 = arith.maximumf %5, %6 : vector<8x32xf32>
    %8 = arith.truncf %7 : vector<8x32xf32> to vector<8x32xbf16>
    %c0_6 = arith.constant 0 : index
    %c0_7 = arith.constant 0 : index
    %9 = vector.load %arg4[%c0_6, %c0_7] : memref<32x2xbf16, #tpu.memory_space<vmem>>, vector<32x2xbf16>
    %cst_8 = arith.constant dense<0.000000e+00> : vector<8x2xf32>
    %10 = tpu.matmul %8, %9, %cst_8 {dimension_numbers = #tpu.dot_dimension_numbers<[1], [0], [0], [1], [0, 0, 1, 1], [], []>} : vector<8x32xbf16>, vector<32x2xbf16>, vector<8x2xf32> -> vector<8x2xf32>
    %c0_9 = arith.constant 0 : index
    %c0_10 = arith.constant 0 : index
    %11 = vector.load %arg5[%c0_9, %c0_10] : memref<1x2xf32, #tpu.memory_space<vmem>>, vector<1x2xf32>
    %12 = vector.broadcast %11 : vector<1x2xf32> to vector<8x2xf32>
    %13 = arith.addf %10, %12 : vector<8x2xf32>
    %cst_11 = arith.constant dense<0xFF800000> : vector<8xf32>
    %14 = vector.multi_reduction <maximumf>, %13, %cst_11 [1] : vector<8x2xf32> to vector<8xf32>
    %15 = vector.shape_cast %14 : vector<8xf32> to vector<8x1xf32>
    %16 = vector.broadcast %15 : vector<8x1xf32> to vector<8x2xf32>
    %17 = arith.subf %13, %16 : vector<8x2xf32>
    %18 = math.exp %17 : vector<8x2xf32>
    %cst_12 = arith.constant dense<0.000000e+00> : vector<8xf32>
    %19 = vector.multi_reduction <add>, %18, %cst_12 [1] : vector<8x2xf32> to vector<8xf32>
    %20 = vector.shape_cast %19 : vector<8xf32> to vector<8x1xf32>
    %21 = vector.broadcast %20 : vector<8x1xf32> to vector<8x2xf32>
    %22 = arith.divf %18, %21 : vector<8x2xf32>
    %c0_13 = arith.constant 0 : index
    %c0_14 = arith.constant 0 : index
    %23 = vector.load %arg6[%c0_13, %c0_14] : memref<8x2xf32, #tpu.memory_space<vmem>>, vector<8x2xf32>
    tpu.vector_store %arg6[%c0_13, %c0_14], %22 {strides = array<i32>} : memref<8x2xf32, #tpu.memory_space<vmem>>, vector<8x2xf32>,
    return
  }
  func.func @transform_0(%arg0: i32) -> (i32, i32) {
    %c0_i32 = arith.constant 0 : i32
    %c0_i32_0 = arith.constant 0 : i32
    return %arg0, %c0_i32 : i32, i32
  }
  func.func @transform_1(%arg0: i32) -> (i32, i32) {
    %c0_i32 = arith.constant 0 : i32
    %c0_i32_0 = arith.constant 0 : i32
    %c0_i32_1 = arith.constant 0 : i32
    return %c0_i32, %c0_i32_0 : i32, i32
  }
  func.func @transform_2(%arg0: i32) -> (i32, i32) {
    %c0_i32 = arith.constant 0 : i32
    %c0_i32_0 = arith.constant 0 : i32
    %c0_i32_1 = arith.constant 0 : i32
    return %c0_i32, %c0_i32_0 : i32, i32
  }
  func.func @transform_3(%arg0: i32) -> (i32, i32) {
    %c0_i32 = arith.constant 0 : i32
    %c0_i32_0 = arith.constant 0 : i32
    %c0_i32_1 = arith.constant 0 : i32
    return %c0_i32, %c0_i32_0 : i32, i32
  }
  func.func @transform_4(%arg0: i32) -> (i32, i32) {
    %c0_i32 = arith.constant 0 : i32
    %c0_i32_0 = arith.constant 0 : i32
    %c0_i32_1 = arith.constant 0 : i32
    return %c0_i32, %c0_i32_0 : i32, i32
  }
  func.func @transform_5(%arg0: i32) -> (i32, i32) {
    %c0_i32 = arith.constant 0 : i32
    %c0_i32_0 = arith.constant 0 : i32
    return %arg0, %c0_i32 : i32, i32
  }
}

</mosaic_0001>

<llo_original>
// kernel: one_hidden_layer_forward.1
$region0: #{one_hidden_layer_forward.1}
  #allocation0 [shape = 'u32[]', space=smem, size = 0x4, offset = 0x4, fixed_abs, tag = 'smem constant byte address 0x4 - core index']
  #allocation1 [shape = 'u32[72,128]{1,0:T(1,128)}', space=vmem, size = 0x9000, scoped, tag = 'internal scratch']
  %s0 = inlined_call_operand.vmem [shape: bf16[8,16], index: 0, kind: input, shape index: {}]
  %s1 = inlined_call_operand.vmem [shape: bf16[16,32], index: 1, kind: input, shape index: {}]
  %s2 = inlined_call_operand.vmem [shape: f32[1,32], index: 2, kind: input, shape index: {}]
  %s3 = inlined_call_operand.vmem [shape: bf16[32,2], index: 3, kind: input, shape index: {}]
  %s4 = inlined_call_operand.vmem [shape: f32[1,2], index: 4, kind: input, shape index: {}]
  %s5 = inlined_call_operand.vmem [shape: f32[8,2], index: 5, kind: output, shape index: {}]
  %s6 = sld [smem:[#allocation0]]
  $region30: #{one_hidden_layer_forward.1} parent=0
    _
  %s8 = ssub.s32 1, %s6
  %s9 = scalar_select 0, %s8, %s6
  // Predicated region
  $region2: #{one_hidden_layer_forward.1} parent=0 // pred_check
    _
  $region3: #{one_hidden_layer_forward.1} parent=0 // pred_check_branch
    %11 = sbr.rel (0) target = $region5
  $region4: #{one_hidden_layer_forward.1} parent=0 // pred_region
    _
  $region5: #{one_hidden_layer_forward.1} parent=0 // pred_fallthru
    _
  // Predicated region
  $region6: #{one_hidden_layer_forward.1} parent=0 // pred_check
    _
  $region7: #{one_hidden_layer_forward.1} parent=0 // pred_check_branch
    %13 = sbr.rel (0) target = $region9
  $region8: #{one_hidden_layer_forward.1} parent=0 // pred_region
    _
  $region9: #{one_hidden_layer_forward.1} parent=0 // pred_fallthru
    _
  // Predicated region
  $region10: #{one_hidden_layer_forward.1} parent=0 // pred_check
    _
  $region11: #{one_hidden_layer_forward.1} parent=0 // pred_check_branch
    %15 = sbr.rel (0) target = $region13
  $region12: #{one_hidden_layer_forward.1} parent=0 // pred_region
    _
  $region13: #{one_hidden_layer_forward.1} parent=0 // pred_fallthru
    _
  // Predicated region
  $region14: #{one_hidden_layer_forward.1} parent=0 // pred_check
    _
  $region15: #{one_hidden_layer_forward.1} parent=0 // pred_check_branch
    %17 = sbr.rel (0) target = $region17
  $region16: #{one_hidden_layer_forward.1} parent=0 // pred_region
    _
  $region17: #{one_hidden_layer_forward.1} parent=0 // pred_fallthru
    _
  // Predicated region
  $region18: #{one_hidden_layer_forward.1} parent=0 // pred_check
    _
  $region19: #{one_hidden_layer_forward.1} parent=0 // pred_check_branch
    %19 = sbr.rel (0) target = $region21
  $region20: #{one_hidden_layer_forward.1} parent=0 // pred_region
    _
  $region21: #{one_hidden_layer_forward.1} parent=0 // pred_fallthru
    _
  %v21 = vld [vmem:[%s0] sm:$0xf]
  %v22 = vld [vmem:[%s1] sm:$0xf]
  %v23 = vld [vmem:[%s1 + $0x4] sm:$0xf]
  %v24 = vld [vmem:[%s2] sm:$0x1]
  %v26 = vperm.slane %v24, 0
  %v30 = vunpack.c.l.b16 %v22
  %v31 = vunpack.c.l.b16 %v23
  %v32 = vpack.c.b16 %v31, %v30
  %vm34 = vcmask 130048
  %v36 = vsel %vm34, %v21, 0
  %38 = vmatpush.bf16.msra.mxu0 0
  %39 = vmatpush.bf16.msra.mxu0 0
  %40 = vmatpush.bf16.msra.mxu0 0
  %41 = vmatpush.bf16.msra.mxu0 0
  %42 = vmatpush.bf16.msra.mxu0 0
  %43 = vmatpush.bf16.msra.mxu0 0
  %44 = vmatpush.bf16.msra.mxu0 0
  %45 = vmatpush.bf16.msra.mxu0 %v32
  %46 = vmatmul.bf16.gmra.mxu0 %v36
  %v47 = vpop.f32.mrf.mxu0
  %v48 = vadd.f32 %v26, %v47
  %v49 = vpop.f32.mrf.mxu0
  %50 = vdwg.mxu0
  %v51 = vmax.f32 %v48, 0.0
  %v52 = vpack.c.bf16 %v51, %v51
  %v53 = vld [vmem:[%s3] sm:$0xf]
  %v54 = vld [vmem:[%s3 + $0x4] sm:$0xf]
  %v55 = vld [vmem:[%s3 + $0x8] sm:$0xf]
  %v56 = vld [vmem:[%s3 + $0xc] sm:$0xf]
  %v57 = vld [vmem:[%s4] sm:$0x1]
  %v59 = vperm.slane %v57, 0
  %v65 = vunpack.c.l.b16 %v53
  %v66 = vunpack.c.l.b16 %v54
  %v67 = vunpack.c.l.b16 %v55
  %v68 = vunpack.c.l.b16 %v56
  %v69 = vpack.c.b16 %v66, %v65
  %v70 = vpack.c.b16 %v68, %v67
  %vm73 = vcmask 261120
  %v75 = vsel %vm73, %v52, 0
  %77 = vmatpush.bf16.msra.mxu0 0
  %78 = vmatpush.bf16.msra.mxu0 0
  %79 = vmatpush.bf16.msra.mxu0 0
  %80 = vmatpush.bf16.msra.mxu0 0
  %81 = vmatpush.bf16.msra.mxu0 0
  %82 = vmatpush.bf16.msra.mxu0 0
  %83 = vmatpush.bf16.msra.mxu0 %v70
  %84 = vmatpush.bf16.msra.mxu0 %v69
  %85 = vmatmul.bf16.gmra.mxu0 %v75
  %v86 = vpop.f32.mrf.mxu0
  %v87 = vadd.f32 %v59, %v86
  %v88 = vpop.f32.mrf.mxu0
  %89 = vdwg.mxu0
  %vm90 = vcmask 15360
  %v91 = vsel %vm90, %v87, -inf
  %92 = vmax.xlane.f32.xlu0 %v91
  %v93 = vpop.xlane.xlu0 %92
  %v94 = vsub.f32 %v87, %v93
  %v95 = vmul.f32 %v94, 1.442695
  %v96 = vpow.pop %v95
  %v97 = vsel %vm90, %v96, 0.0
  %98 = vadd.xlane.f32.xlu0 %v97
  %v99 = vpop.xlane.xlu0 %98
  %v100 = vrcp.pop %v99
  %v101 = vmul.f32 %v99, %v100
  %v102 = vsub.f32 1.0, %v101
  %v103 = vmul.f32 %v100, %v102
  %v104 = vadd.f32 %v100, %v103
  %vm105 = vweird.f32 %v99
  %vm106 = vweird.f32 %v100
  %vm107 = vmor %vm105, %vm106
  %v108 = vsel %vm107, %v100, %v104
  %v109 = vand.u32 2147483647, %v99
  %vm110 = vcmp.eq.f32.partialorder %v109, 8.507059e+37
  %v111 = vand.u32 %v99, 2147483648
  %v112 = vor.u32 1.1754944e-38, %v111
  %v113 = vsel %vm110, %v112, %v108
  %v114 = vmul.f32 %v96, %v113
  %115 = vst.msk [vmem:[%s5] sm:$0xff] %vm90, %v114
  // Predicated region
  $region22: #{one_hidden_layer_forward.1} parent=0 // pred_check
    _
  $region23: #{one_hidden_layer_forward.1} parent=0 // pred_check_branch
    %117 = sbr.rel (0) target = $region25
  $region24: #{one_hidden_layer_forward.1} parent=0 // pred_region
    _
  $region25: #{one_hidden_layer_forward.1} parent=0 // pred_fallthru
    _
  // Predicated region
  $region26: #{one_hidden_layer_forward.1} parent=0 // pred_check
    _
  $region27: #{one_hidden_layer_forward.1} parent=0 // pred_check_branch
    %119 = sbr.rel (0) target = $region29
  $region28: #{one_hidden_layer_forward.1} parent=0 // pred_region
    _
  $region29: #{one_hidden_layer_forward.1} parent=0 // pred_fallthru
    _

</llo_original>
